<compile_context>
chip_gen: v6e
topology: v6e:2x2x1
jax: 0.10.0
libtpu: 0.0.40
codegen_flags: <defaults>
</compile_context>

<pallas_src>
import jax
import jax.numpy as jnp
from jax.experimental import pallas as pl
from jax.experimental.pallas import tpu as pltpu

LN_EPS = 1e-5           # torch.nn.LayerNorm default
TB_MAX = 4096           # max batch-tile rows (safe across v5e/v6e/v7x VMEM)


def _cdiv(a, b):
    return (a + b - 1) // b


def _round_up(x, m):
    return _cdiv(x, m) * m


# ---------------------------------------------------------------------------
# In-kernel helpers
# ---------------------------------------------------------------------------
def _layernorm_relu(y, gamma, beta):
    """Single-pass LayerNorm (biased var, clamped) followed by ReLU, in f32."""
    inv_d = 1.0 / y.shape[-1]                        # folded at trace time
    s = jnp.sum(y, axis=-1, keepdims=True)
    ss = jnp.sum(y * y, axis=-1, keepdims=True)
    mean = s * inv_d
    var = jnp.maximum(ss * inv_d - mean * mean, 0.0)  # guard cancellation
    yn = (y - mean) * jax.lax.rsqrt(var + LN_EPS)     # rsqrt -> EUP slot
    return jnp.maximum(yn * gamma + beta, 0.0)


def _make_fused_kernel(block_has_proj):
    """Fused MLP kernel.

    Ref layout (inputs..., then the single output ref):
      x,
      per residual block: w (or [w|wr] concat), b (or [b|br] concat), gamma, beta,
      final w as (d_out, d_last), final b as (d_out, 1),
      o_ref of shape (1, d_out, tb)      # batch rows along the lane dim
    """

    def kernel(*refs):
        x_ref = refs[0]
        o_ref = refs[-1]
        idx = 1
        h = x_ref[...]                               # (tb, d_in) f32

        for has_proj in block_has_proj:              # unrolled at trace time
            w_ref, b_ref, g_ref, beta_ref = refs[idx:idx + 4]
            idx += 4
            y = jnp.dot(h, w_ref[...],
                        preferred_element_type=jnp.float32) + b_ref[...]
            d_out = g_ref.shape[-1]
            if has_proj:
                # one 128-lane matmul: first d_out lanes = main path,
                # remaining lanes = linear shortcut
                res = y[:, d_out:]
                y = y[:, :d_out]
            else:
                res = h
            h = _layernorm_relu(y, g_ref[...], beta_ref[...]) + res

        w_ref, b_ref = refs[idx:idx + 2]
        # Final linear as w (d_out, d_last) contracted against h (tb, d_last)
        # along the feature axis -> (d_out, tb): the result is lane-dense along
        # the batch axis, so the HBM writeback is a dense 4 B/row store.
        z = jax.lax.dot_general(
            w_ref[...], h,
            (((1,), (1,)), ((), ())),
            preferred_element_type=jnp.float32) + b_ref[...]
        o_ref[...] = z.reshape(o_ref.shape)

    return kernel


# ---------------------------------------------------------------------------
# Parameter packing: per-layer dicts -> flat kernel args
# ---------------------------------------------------------------------------
def pack_params(params):
    """Concatenate projection weights; transpose the final linear layer."""
    flat = []
    block_has_proj = []
    for p in params[:-1]:
        if "wr" in p:
            flat += [jnp.concatenate([p["w"], p["wr"]], axis=1),
                     jnp.concatenate([p["b"], p["br"]], axis=1),
                     p["gamma"], p["beta"]]
            block_has_proj.append(True)
        else:
            flat += [p["w"], p["b"], p["gamma"], p["beta"]]
            block_has_proj.append(False)

    last = params[-1]
    d_last, d_out = last["w"].shape
    flat += [jnp.transpose(last["w"]),                 # (d_out, d_last)
             jnp.reshape(last["b"], (d_out, 1))]       # (d_out, 1)
    return flat, tuple(block_has_proj), d_out


# ---------------------------------------------------------------------------
# Forward wrapper: single fused pallas_call with a batch-tiled parallel grid
# ---------------------------------------------------------------------------
def adversarial_mlp_forward(x, params, tb_max=TB_MAX,
                            vmem_limit_bytes=32 * 1024 * 1024):
    flat, block_has_proj, d_out = pack_params(params)
    batch, d_in = x.shape

    # Tile rows: multiple of 8, capped, and chosen so large batches give >= 8
    # grid steps (lets "parallel" shard across v7x's two TensorCores).
    tb = max(8, min(tb_max, _round_up(_cdiv(batch, 8), 8)))
    grid_n = _cdiv(batch, tb)

    # Specs: x tiled over the batch; params are full resident blocks (their
    # block index never changes, so Pallas only DMAs them once).
    in_specs = [pl.BlockSpec((tb, d_in), lambda i: (i, 0))]
    for a in flat:
        in_specs.append(pl.BlockSpec(a.shape, lambda i: (0, 0)))
    out_specs = pl.BlockSpec((1, d_out, tb), lambda i: (i, 0, 0))

    # Advisory cost estimate for XLA's scheduler.
    flops = 0
    for p in params[:-1]:
        di, do = p["w"].shape
        flops += 2 * batch * di * do
        if "wr" in p:
            flops += 2 * batch * di * do
    dl, dof = params[-1]["w"].shape
    flops += 2 * batch * dl * dof
    bytes_accessed = (batch * d_in + batch * d_out) * 4
    for a in flat:
        bytes_accessed += a.size * 4
    cost = pl.CostEstimate(flops=flops,
                           transcendentals=batch * len(block_has_proj),
                           bytes_accessed=bytes_accessed)

    out = pl.pallas_call(
        _make_fused_kernel(block_has_proj),
        out_shape=jax.ShapeDtypeStruct((grid_n, d_out, tb), jnp.float32),
        grid=(grid_n,),
        in_specs=in_specs,
        out_specs=out_specs,
        compiler_params=pltpu.CompilerParams(
            dimension_semantics=("parallel",),
            vmem_limit_bytes=vmem_limit_bytes),
        cost_estimate=cost,
    )(x, *flat)

    # (grid, d_out, tb) -> (grid*tb, d_out); drop ragged-tail garbage rows.
    out = jnp.transpose(out, (0, 2, 1)).reshape(grid_n * tb, d_out)
    return out[:batch]


# ---------------------------------------------------------------------------
# Deterministic parameter init (Xavier uniform weights, zero biases,
# LayerNorm gamma=1 / beta=0), matching AdversarialMLP.init_weights.
# ---------------------------------------------------------------------------
def xavier_uniform(key, fan_in, fan_out):
    bound = jnp.sqrt(6.0 / (fan_in + fan_out))
    return jax.random.uniform(key, (fan_in, fan_out), jnp.float32,
                              minval=-bound, maxval=bound)


def init_params(key, hidden_dims, output_dim):
    params = []
    for d_in, d_out in zip(hidden_dims[:-1], hidden_dims[1:]):
        key, k1, k2 = jax.random.split(key, 3)
        p = {
            "w": xavier_uniform(k1, d_in, d_out),
            "b": jnp.zeros((1, d_out), jnp.float32),
            "gamma": jnp.ones((1, d_out), jnp.float32),
            "beta": jnp.zeros((1, d_out), jnp.float32),
        }
        if d_in != d_out:
            p["wr"] = xavier_uniform(k2, d_in, d_out)
            p["br"] = jnp.zeros((1, d_out), jnp.float32)
        params.append(p)
    key, k1 = jax.random.split(key)
    params.append({
        "w": xavier_uniform(k1, hidden_dims[-1], output_dim),
        "b": jnp.zeros((1, output_dim), jnp.float32),
    })
    return params


# ---------------------------------------------------------------------------
# Pure-JAX reference for verification
# ---------------------------------------------------------------------------
def reference_forward(x, all_params):
    for p in all_params[:-1]:
        y = x @ p["w"] + p["b"]
        mean = jnp.mean(y, axis=-1, keepdims=True)
        var = jnp.mean(jnp.square(y - mean), axis=-1, keepdims=True)
        y = (y - mean) * jax.lax.rsqrt(var + LN_EPS) * p["gamma"] + p["beta"]
        y = jnp.maximum(y, 0.0)
        res = x @ p["wr"] + p["br"] if "wr" in p else x
        x = y + res
    return x @ all_params[-1]["w"] + all_params[-1]["b"]


if __name__ == "__main__":
    hidden_dims = [32, 32, 64]       # opt.hidden_structure
    output_dim = 1
    batch = 8

    key = jax.random.PRNGKey(0)
    kx, kp = jax.random.split(key)
    x = jax.random.normal(kx, (batch, hidden_dims[0]), jnp.float32)
    params = init_params(kp, hidden_dims, output_dim)

    out = adversarial_mlp_forward(x, params)
    out = jax.block_until_ready(out)

    ref = reference_forward(x, params)
    assert out.shape == (batch, output_dim), out.shape
    assert jnp.allclose(out, ref, atol=1e-4, rtol=1e-3), (out, ref)

    print("KERNEL_OK")
</pallas_src>

<mosaic_0001>
module attributes {stable_mosaic.version = 11 : i64} {
  func.func @kernel(%arg0: i32, %arg1: memref<8x32xf32, #tpu.memory_space<vmem>>, %arg2: memref<32x32xf32, #tpu.memory_space<vmem>>, %arg3: memref<1x32xf32, #tpu.memory_space<vmem>>, %arg4: memref<1x32xf32, #tpu.memory_space<vmem>>, %arg5: memref<1x32xf32, #tpu.memory_space<vmem>>, %arg6: memref<32x128xf32, #tpu.memory_space<vmem>>, %arg7: memref<1x128xf32, #tpu.memory_space<vmem>>, %arg8: memref<1x64xf32, #tpu.memory_space<vmem>>, %arg9: memref<1x64xf32, #tpu.memory_space<vmem>>, %arg10: memref<1x64xf32, #tpu.memory_space<vmem>>, %arg11: memref<1x1xf32, #tpu.memory_space<vmem>>, %arg12: memref<1x1x8xf32, #tpu.memory_space<vmem>>) attributes {dimension_semantics = [#tpu.dimension_semantics<parallel>], iteration_bounds = array<i64: 1>, scalar_prefetch = 0 : i64, scratch_operands = 0 : i64, tpu.core_type = #tpu.core_type<tc>, window_params = [{transform_indices = @transform_0, window_bounds = array<i64: 8, 32>}, {pipeline_mode = #tpu.pipeline_mode<synchronous>, transform_indices = @transform_1, window_bounds = array<i64: 32, 32>}, {pipeline_mode = #tpu.pipeline_mode<synchronous>, transform_indices = @transform_2, window_bounds = array<i64: 1, 32>}, {pipeline_mode = #tpu.pipeline_mode<synchronous>, transform_indices = @transform_3, window_bounds = array<i64: 1, 32>}, {pipeline_mode = #tpu.pipeline_mode<synchronous>, transform_indices = @transform_4, window_bounds = array<i64: 1, 32>}, {pipeline_mode = #tpu.pipeline_mode<synchronous>, transform_indices = @transform_5, window_bounds = array<i64: 32, 128>}, {pipeline_mode = #tpu.pipeline_mode<synchronous>, transform_indices = @transform_6, window_bounds = array<i64: 1, 128>}, {pipeline_mode = #tpu.pipeline_mode<synchronous>, transform_indices = @transform_7, window_bounds = array<i64: 1, 64>}, {pipeline_mode = #tpu.pipeline_mode<synchronous>, transform_indices = @transform_8, window_bounds = array<i64: 1, 64>}, {pipeline_mode = #tpu.pipeline_mode<synchronous>, transform_indices = @transform_9, window_bounds = array<i64: 1, 64>}, {pipeline_mode = #tpu.pipeline_mode<synchronous>, transform_indices = @transform_10, window_bounds = array<i64: 1, 1>}, {transform_indices = @transform_11, window_bounds = array<i64: 1, 1, 8>}]} {
    %c0 = arith.constant 0 : index
    %c0_0 = arith.constant 0 : index
    %0 = vector.load %arg1[%c0, %c0_0] : memref<8x32xf32, #tpu.memory_space<vmem>>, vector<8x32xf32>
    %c0_1 = arith.constant 0 : index
    %c0_2 = arith.constant 0 : index
    %1 = vector.load %arg2[%c0_1, %c0_2] : memref<32x32xf32, #tpu.memory_space<vmem>>, vector<32x32xf32>
    %cst = arith.constant dense<0.000000e+00> : vector<8x32xf32>
    %2 = tpu.matmul %0, %1, %cst {dimension_numbers = #tpu.dot_dimension_numbers<[1], [0], [0], [1], [0, 0, 1, 1], [], []>} : vector<8x32xf32>, vector<32x32xf32>, vector<8x32xf32> -> vector<8x32xf32>
    %c0_3 = arith.constant 0 : index
    %c0_4 = arith.constant 0 : index
    %3 = vector.load %arg3[%c0_3, %c0_4] : memref<1x32xf32, #tpu.memory_space<vmem>>, vector<1x32xf32>
    %4 = vector.broadcast %3 : vector<1x32xf32> to vector<8x32xf32>
    %5 = arith.addf %2, %4 : vector<8x32xf32>
    %c0_5 = arith.constant 0 : index
    %c0_6 = arith.constant 0 : index
    %6 = vector.load %arg4[%c0_5, %c0_6] : memref<1x32xf32, #tpu.memory_space<vmem>>, vector<1x32xf32>
    %c0_7 = arith.constant 0 : index
    %c0_8 = arith.constant 0 : index
    %7 = vector.load %arg5[%c0_7, %c0_8] : memref<1x32xf32, #tpu.memory_space<vmem>>, vector<1x32xf32>
    %cst_9 = arith.constant dense<0.000000e+00> : vector<8xf32>
    %8 = vector.multi_reduction <add>, %5, %cst_9 [1] : vector<8x32xf32> to vector<8xf32>
    %9 = vector.shape_cast %8 : vector<8xf32> to vector<8x1xf32>
    %10 = arith.mulf %5, %5 : vector<8x32xf32>
    %cst_10 = arith.constant dense<0.000000e+00> : vector<8xf32>
    %11 = vector.multi_reduction <add>, %10, %cst_10 [1] : vector<8x32xf32> to vector<8xf32>
    %12 = vector.shape_cast %11 : vector<8xf32> to vector<8x1xf32>
    %cst_11 = arith.constant 3.125000e-02 : f32
    %13 = vector.broadcast %cst_11 : f32 to vector<8x1xf32>
    %14 = arith.mulf %9, %13 : vector<8x1xf32>
    %cst_12 = arith.constant 3.125000e-02 : f32
    %15 = vector.broadcast %cst_12 : f32 to vector<8x1xf32>
    %16 = arith.mulf %12, %15 : vector<8x1xf32>
    %17 = arith.mulf %14, %14 : vector<8x1xf32>
    %18 = arith.subf %16, %17 : vector<8x1xf32>
    %cst_13 = arith.constant 0.000000e+00 : f32
    %19 = vector.broadcast %cst_13 : f32 to vector<8x1xf32>
    %20 = arith.maximumf %18, %19 : vector<8x1xf32>
    %21 = vector.broadcast %14 : vector<8x1xf32> to vector<8x32xf32>
    %22 = arith.subf %5, %21 : vector<8x32xf32>
    %cst_14 = arith.constant 9.99999974E-6 : f32
    %23 = vector.broadcast %cst_14 : f32 to vector<8x1xf32>
    %24 = arith.addf %20, %23 : vector<8x1xf32>
    %25 = math.rsqrt %24 : vector<8x1xf32>
    %26 = vector.broadcast %25 : vector<8x1xf32> to vector<8x32xf32>
    %27 = arith.mulf %22, %26 : vector<8x32xf32>
    %28 = vector.broadcast %6 : vector<1x32xf32> to vector<8x32xf32>
    %29 = arith.mulf %27, %28 : vector<8x32xf32>
    %30 = vector.broadcast %7 : vector<1x32xf32> to vector<8x32xf32>
    %31 = arith.addf %29, %30 : vector<8x32xf32>
    %cst_15 = arith.constant 0.000000e+00 : f32
    %32 = vector.broadcast %cst_15 : f32 to vector<8x32xf32>
    %33 = arith.maximumf %31, %32 : vector<8x32xf32>
    %34 = arith.addf %33, %0 : vector<8x32xf32>
    %c0_16 = arith.constant 0 : index
    %c0_17 = arith.constant 0 : index
    %35 = vector.load %arg6[%c0_16, %c0_17] : memref<32x128xf32, #tpu.memory_space<vmem>>, vector<32x128xf32>
    %cst_18 = arith.constant dense<0.000000e+00> : vector<8x128xf32>
    %36 = tpu.matmul %34, %35, %cst_18 {dimension_numbers = #tpu.dot_dimension_numbers<[1], [0], [0], [1], [0, 0, 1, 1], [], []>} : vector<8x32xf32>, vector<32x128xf32>, vector<8x128xf32> -> vector<8x128xf32>
    %c0_19 = arith.constant 0 : index
    %c0_20 = arith.constant 0 : index
    %37 = vector.load %arg7[%c0_19, %c0_20] : memref<1x128xf32, #tpu.memory_space<vmem>>, vector<1x128xf32>
    %38 = vector.broadcast %37 : vector<1x128xf32> to vector<8x128xf32>
    %39 = arith.addf %36, %38 : vector<8x128xf32>
    %40 = vector.extract_strided_slice %39 {offsets = [0, 64], sizes = [8, 64], strides = [1, 1]} : vector<8x128xf32> to vector<8x64xf32>
    %41 = vector.extract_strided_slice %39 {offsets = [0, 0], sizes = [8, 64], strides = [1, 1]} : vector<8x128xf32> to vector<8x64xf32>
    %c0_21 = arith.constant 0 : index
    %c0_22 = arith.constant 0 : index
    %42 = vector.load %arg8[%c0_21, %c0_22] : memref<1x64xf32, #tpu.memory_space<vmem>>, vector<1x64xf32>
    %c0_23 = arith.constant 0 : index
    %c0_24 = arith.constant 0 : index
    %43 = vector.load %arg9[%c0_23, %c0_24] : memref<1x64xf32, #tpu.memory_space<vmem>>, vector<1x64xf32>
    %cst_25 = arith.constant dense<0.000000e+00> : vector<8xf32>
    %44 = vector.multi_reduction <add>, %41, %cst_25 [1] : vector<8x64xf32> to vector<8xf32>
    %45 = vector.shape_cast %44 : vector<8xf32> to vector<8x1xf32>
    %46 = arith.mulf %41, %41 : vector<8x64xf32>
    %cst_26 = arith.constant dense<0.000000e+00> : vector<8xf32>
    %47 = vector.multi_reduction <add>, %46, %cst_26 [1] : vector<8x64xf32> to vector<8xf32>
    %48 = vector.shape_cast %47 : vector<8xf32> to vector<8x1xf32>
    %cst_27 = arith.constant 1.562500e-02 : f32
    %49 = vector.broadcast %cst_27 : f32 to vector<8x1xf32>
    %50 = arith.mulf %45, %49 : vector<8x1xf32>
    %cst_28 = arith.constant 1.562500e-02 : f32
    %51 = vector.broadcast %cst_28 : f32 to vector<8x1xf32>
    %52 = arith.mulf %48, %51 : vector<8x1xf32>
    %53 = arith.mulf %50, %50 : vector<8x1xf32>
    %54 = arith.subf %52, %53 : vector<8x1xf32>
    %cst_29 = arith.constant 0.000000e+00 : f32
    %55 = vector.broadcast %cst_29 : f32 to vector<8x1xf32>
    %56 = arith.maximumf %54, %55 : vector<8x1xf32>
    %57 = vector.broadcast %50 : vector<8x1xf32> to vector<8x64xf32>
    %58 = arith.subf %41, %57 : vector<8x64xf32>
    %cst_30 = arith.constant 9.99999974E-6 : f32
    %59 = vector.broadcast %cst_30 : f32 to vector<8x1xf32>
    %60 = arith.addf %56, %59 : vector<8x1xf32>
    %61 = math.rsqrt %60 : vector<8x1xf32>
    %62 = vector.broadcast %61 : vector<8x1xf32> to vector<8x64xf32>
    %63 = arith.mulf %58, %62 : vector<8x64xf32>
    %64 = vector.broadcast %42 : vector<1x64xf32> to vector<8x64xf32>
    %65 = arith.mulf %63, %64 : vector<8x64xf32>
    %66 = vector.broadcast %43 : vector<1x64xf32> to vector<8x64xf32>
    %67 = arith.addf %65, %66 : vector<8x64xf32>
    %cst_31 = arith.constant 0.000000e+00 : f32
    %68 = vector.broadcast %cst_31 : f32 to vector<8x64xf32>
    %69 = arith.maximumf %67, %68 : vector<8x64xf32>
    %70 = arith.addf %69, %40 : vector<8x64xf32>
    %c0_32 = arith.constant 0 : index
    %c0_33 = arith.constant 0 : index
    %71 = vector.load %arg10[%c0_32, %c0_33] : memref<1x64xf32, #tpu.memory_space<vmem>>, vector<1x64xf32>
    %cst_34 = arith.constant dense<0.000000e+00> : vector<1x8xf32>
    %72 = tpu.matmul %71, %70, %cst_34 {dimension_numbers = #tpu.dot_dimension_numbers<[1], [1], [0], [0], [0, 0, 1, 0], [], []>} : vector<1x64xf32>, vector<8x64xf32>, vector<1x8xf32> -> vector<1x8xf32>
    %c0_35 = arith.constant 0 : index
    %c0_36 = arith.constant 0 : index
    %73 = vector.load %arg11[%c0_35, %c0_36] : memref<1x1xf32, #tpu.memory_space<vmem>>, vector<1x1xf32>
    %74 = vector.broadcast %73 : vector<1x1xf32> to vector<1x8xf32>
    %75 = arith.addf %72, %74 : vector<1x8xf32>
    %76 = vector.shape_cast %75 : vector<1x8xf32> to vector<1x1x8xf32>
    %c0_37 = arith.constant 0 : index
    %c0_38 = arith.constant 0 : index
    %c0_39 = arith.constant 0 : index
    %77 = vector.load %arg12[%c0_37, %c0_38, %c0_39] : memref<1x1x8xf32, #tpu.memory_space<vmem>>, vector<1x1x8xf32>
    tpu.vector_store %arg12[%c0_37, %c0_38, %c0_39], %76 {strides = array<i32>} : memref<1x1x8xf32, #tpu.memory_space<vmem>>, vector<1x1x8xf32>,
    return
  }
  func.func @transform_0(%arg0: i32) -> (i32, i32) {
    %c0_i32 = arith.constant 0 : i32
    %c0_i32_0 = arith.constant 0 : i32
    return %arg0, %c0_i32 : i32, i32
  }
  func.func @transform_1(%arg0: i32) -> (i32, i32) {
    %c0_i32 = arith.constant 0 : i32
    %c0_i32_0 = arith.constant 0 : i32
    %c0_i32_1 = arith.constant 0 : i32
    return %c0_i32, %c0_i32_0 : i32, i32
  }
  func.func @transform_2(%arg0: i32) -> (i32, i32) {
    %c0_i32 = arith.constant 0 : i32
    %c0_i32_0 = arith.constant 0 : i32
    %c0_i32_1 = arith.constant 0 : i32
    return %c0_i32, %c0_i32_0 : i32, i32
  }
  func.func @transform_3(%arg0: i32) -> (i32, i32) {
    %c0_i32 = arith.constant 0 : i32
    %c0_i32_0 = arith.constant 0 : i32
    %c0_i32_1 = arith.constant 0 : i32
    return %c0_i32, %c0_i32_0 : i32, i32
  }
  func.func @transform_4(%arg0: i32) -> (i32, i32) {
    %c0_i32 = arith.constant 0 : i32
    %c0_i32_0 = arith.constant 0 : i32
    %c0_i32_1 = arith.constant 0 : i32
    return %c0_i32, %c0_i32_0 : i32, i32
  }
  func.func @transform_5(%arg0: i32) -> (i32, i32) {
    %c0_i32 = arith.constant 0 : i32
    %c0_i32_0 = arith.constant 0 : i32
    %c0_i32_1 = arith.constant 0 : i32
    return %c0_i32, %c0_i32_0 : i32, i32
  }
  func.func @transform_6(%arg0: i32) -> (i32, i32) {
    %c0_i32 = arith.constant 0 : i32
    %c0_i32_0 = arith.constant 0 : i32
    %c0_i32_1 = arith.constant 0 : i32
    return %c0_i32, %c0_i32_0 : i32, i32
  }
  func.func @transform_7(%arg0: i32) -> (i32, i32) {
    %c0_i32 = arith.constant 0 : i32
    %c0_i32_0 = arith.constant 0 : i32
    %c0_i32_1 = arith.constant 0 : i32
    return %c0_i32, %c0_i32_0 : i32, i32
  }
  func.func @transform_8(%arg0: i32) -> (i32, i32) {
    %c0_i32 = arith.constant 0 : i32
    %c0_i32_0 = arith.constant 0 : i32
    %c0_i32_1 = arith.constant 0 : i32
    return %c0_i32, %c0_i32_0 : i32, i32
  }
  func.func @transform_9(%arg0: i32) -> (i32, i32) {
    %c0_i32 = arith.constant 0 : i32
    %c0_i32_0 = arith.constant 0 : i32
    %c0_i32_1 = arith.constant 0 : i32
    return %c0_i32, %c0_i32_0 : i32, i32
  }
  func.func @transform_10(%arg0: i32) -> (i32, i32) {
    %c0_i32 = arith.constant 0 : i32
    %c0_i32_0 = arith.constant 0 : i32
    %c0_i32_1 = arith.constant 0 : i32
    return %c0_i32, %c0_i32_0 : i32, i32
  }
  func.func @transform_11(%arg0: i32) -> (i32, i32, i32) {
    %c0_i32 = arith.constant 0 : i32
    %c0_i32_0 = arith.constant 0 : i32
    %c0_i32_1 = arith.constant 0 : i32
    return %arg0, %c0_i32, %c0_i32_0 : i32, i32, i32
  }
}

</mosaic_0001>

<llo_original>
// kernel: tpu_custom_call.1
$region0: #{tpu_custom_call.1}
  #allocation0 [shape = 'u32[]', space=smem, size = 0x4, offset = 0x4, fixed_abs, tag = 'smem constant byte address 0x4 - core index']
  #allocation1 [shape = 'u32[144,128]{1,0:T(1,128)}', space=vmem, size = 0x12000, scoped, tag = 'internal scratch']
  #allocation2 [shape = 'f32[1,1]{1,0:T(1,128)S(1)}', space=vmem, size = 0x200, scoped, tag = 'scoped memory for tpu_custom_call.1']
  %s0 = inlined_call_operand.hbm [shape: f32[8,32], index: 0, kind: input, shape index: {}]
  %s1 = inlined_call_operand.hbm [shape: f32[32,32], index: 1, kind: input, shape index: {}]
  %s2 = inlined_call_operand.vmem [shape: f32[1,32], index: 2, kind: input, shape index: {}]
  %s3 = inlined_call_operand.vmem [shape: f32[1,32], index: 3, kind: input, shape index: {}]
  %s4 = inlined_call_operand.vmem [shape: f32[1,32], index: 4, kind: input, shape index: {}]
  %s5 = inlined_call_operand.hbm [shape: f32[32,128], index: 5, kind: input, shape index: {}]
  %s6 = inlined_call_operand.vmem [shape: f32[1,128], index: 6, kind: input, shape index: {}]
  %s7 = inlined_call_operand.vmem [shape: f32[1,64], index: 7, kind: input, shape index: {}]
  %s8 = inlined_call_operand.vmem [shape: f32[1,64], index: 8, kind: input, shape index: {}]
  %s9 = inlined_call_operand.vmem [shape: f32[1,64], index: 9, kind: input, shape index: {}]
  %s10 = inlined_call_operand.<no memory space> [shape: f32[1,1], index: 10, kind: input, shape index: {}]
  %s11 = inlined_call_operand.hbm [shape: f32[1,1,8], index: 11, kind: output, shape index: {}]
  %s12 = sld [smem:[#allocation0]]
  $region66: #{tpu_custom_call.1} parent=0
    _
  %s14 = ssub.s32 1, %s12
  %s15 = scalar_select 0, %s14, %s12
  %v16 = vstv %s10
  %17 = vst [vmem:[#allocation2] sm:$0x1] %v16
  $region1: #{tpu_custom_call.1} parent=0
    #allocation3 [shape = 'u8[4096]{0}', space=vmem, size = 0x1000, scoped, tag = 'input window, operand 0, single buffered']
    #allocation4 [shape = 's32[1]{0}', space=sflag, size = 0x4, scoped, tag = 'scoped memory for tpu_custom_call.1']
    #allocation5 [shape = 's32[1]{0}', space=sflag, size = 0x4, scoped, tag = 'scoped memory for tpu_custom_call.1']
    #allocation6 [shape = 'u8[16384]{0}', space=vmem, size = 0x4000, scoped, tag = 'input window, operand 1, single buffered']
    #allocation7 [shape = 's32[1]{0}', space=sflag, size = 0x4, scoped, tag = 'scoped memory for tpu_custom_call.1']
    #allocation8 [shape = 'u8[16384]{0}', space=vmem, size = 0x4000, scoped, tag = 'input window, operand 5, single buffered']
    #allocation9 [shape = 'u8[512]{0}', space=vmem, size = 0x400, scoped, tag = 'output window, operand 0, single buffered']
    %18 = vsyncpa [#allocation4], 0
    %19 = vsyncpa [#allocation7], 0
    %20 = vsyncpa [#allocation5], 0
    // Predicated region
    $region2: #{tpu_custom_call.1} parent=1 // pred_check
      _
    $region3: #{tpu_custom_call.1} parent=1 // pred_check_branch
      %22 = sbr.rel (0) target = $region5
    $region4: #{tpu_custom_call.1} parent=1 // pred_region
      %s24 = ssub.s32 128, 128
      %25 = vsyncadd [#allocation4], %s24
      %s27 = sshll.u32 [#allocation3], 4
      %s28 = int_to_ptr.vmem [resolvable:$true] %s27
      %30 = dma.hbm_to_vmem [thread:$0]  %s0, 128, %s28, [#allocation4]
    $region5: #{tpu_custom_call.1} parent=1 // pred_fallthru
      _
    // Predicated region
    $region6: #{tpu_custom_call.1} parent=1 // pred_check
      _
    $region7: #{tpu_custom_call.1} parent=1 // pred_check_branch
      %32 = sbr.rel (0) target = $region9
    $region8: #{tpu_custom_call.1} parent=1 // pred_region
      %s34 = ssub.s32 512, 512
      %35 = vsyncadd [#allocation7], %s34
      %s36 = sshll.u32 [#allocation6], 4
      %s37 = int_to_ptr.vmem [resolvable:$true] %s36
      %42 = dma.hbm_to_vmem [thread:$0]  %s1, 512, %s37, [#allocation7], 128, 128, 8
    $region9: #{tpu_custom_call.1} parent=1 // pred_fallthru
      _
    // Predicated region
    $region10: #{tpu_custom_call.1} parent=1 // pred_check
      _
    $region11: #{tpu_custom_call.1} parent=1 // pred_check_branch
      %44 = sbr.rel (0) target = $region13
    $region12: #{tpu_custom_call.1} parent=1 // pred_region
      _
    $region13: #{tpu_custom_call.1} parent=1 // pred_fallthru
      _
    // Predicated region
    $region14: #{tpu_custom_call.1} parent=1 // pred_check
      _
    $region15: #{tpu_custom_call.1} parent=1 // pred_check_branch
      %46 = sbr.rel (0) target = $region17
    $region16: #{tpu_custom_call.1} parent=1 // pred_region
      _
    $region17: #{tpu_custom_call.1} parent=1 // pred_fallthru
      _
    // Predicated region
    $region18: #{tpu_custom_call.1} parent=1 // pred_check
      _
    $region19: #{tpu_custom_call.1} parent=1 // pred_check_branch
      %48 = sbr.rel (0) target = $region21
    $region20: #{tpu_custom_call.1} parent=1 // pred_region
      _
    $region21: #{tpu_custom_call.1} parent=1 // pred_fallthru
      _
    // Predicated region
    $region22: #{tpu_custom_call.1} parent=1 // pred_check
      _
    $region23: #{tpu_custom_call.1} parent=1 // pred_check_branch
      %50 = sbr.rel (0) target = $region25
    $region24: #{tpu_custom_call.1} parent=1 // pred_region
      %s52 = ssub.s32 512, 512
      %53 = vsyncadd [#allocation7], %s52
      %s54 = sshll.u32 [#allocation8], 4
      %s55 = int_to_ptr.vmem [resolvable:$true] %s54
      %60 = dma.hbm_to_vmem [thread:$0]  %s5, 512, %s55, [#allocation7], 128, 128, 8
    $region25: #{tpu_custom_call.1} parent=1 // pred_fallthru
      _
    // Predicated region
    $region26: #{tpu_custom_call.1} parent=1 // pred_check
      _
    $region27: #{tpu_custom_call.1} parent=1 // pred_check_branch
      %62 = sbr.rel (0) target = $region29
    $region28: #{tpu_custom_call.1} parent=1 // pred_region
      _
    $region29: #{tpu_custom_call.1} parent=1 // pred_fallthru
      _
    // Predicated region
    $region30: #{tpu_custom_call.1} parent=1 // pred_check
      _
    $region31: #{tpu_custom_call.1} parent=1 // pred_check_branch
      %64 = sbr.rel (0) target = $region33
    $region32: #{tpu_custom_call.1} parent=1 // pred_region
      _
    $region33: #{tpu_custom_call.1} parent=1 // pred_fallthru
      _
    // Predicated region
    $region34: #{tpu_custom_call.1} parent=1 // pred_check
      _
    $region35: #{tpu_custom_call.1} parent=1 // pred_check_branch
      %66 = sbr.rel (0) target = $region37
    $region36: #{tpu_custom_call.1} parent=1 // pred_region
      _
    $region37: #{tpu_custom_call.1} parent=1 // pred_fallthru
      _
    // Predicated region
    $region38: #{tpu_custom_call.1} parent=1 // pred_check
      _
    $region39: #{tpu_custom_call.1} parent=1 // pred_check_branch
      %68 = sbr.rel (0) target = $region41
    $region40: #{tpu_custom_call.1} parent=1 // pred_region
      _
    $region41: #{tpu_custom_call.1} parent=1 // pred_fallthru
      _
    // Predicated region
    $region42: #{tpu_custom_call.1} parent=1 // pred_check
      _
    $region43: #{tpu_custom_call.1} parent=1 // pred_check_branch
      %70 = sbr.rel (0) target = $region45
    $region44: #{tpu_custom_call.1} parent=1 // pred_region
      _
    $region45: #{tpu_custom_call.1} parent=1 // pred_fallthru
      _
    // Predicated region
    $region46: #{tpu_custom_call.1} parent=1 // pred_check
      _
    $region47: #{tpu_custom_call.1} parent=1 // pred_check_branch
      %72 = sbr.rel (0) target = $region49
    $region48: #{tpu_custom_call.1} parent=1 // pred_region
      %73 = dma.done [#allocation4], 128
    $region49: #{tpu_custom_call.1} parent=1 // pred_fallthru
      _
    // Predicated region
    $region50: #{tpu_custom_call.1} parent=1 // pred_check
      _
    $region51: #{tpu_custom_call.1} parent=1 // pred_check_branch
      %75 = sbr.rel (0) target = $region53
    $region52: #{tpu_custom_call.1} parent=1 // pred_region
      %76 = dma.done [#allocation7], 512
    $region53: #{tpu_custom_call.1} parent=1 // pred_fallthru
      _
    // Predicated region
    $region54: #{tpu_custom_call.1} parent=1 // pred_check
      _
    $region55: #{tpu_custom_call.1} parent=1 // pred_check_branch
      %78 = sbr.rel (0) target = $region57
    $region56: #{tpu_custom_call.1} parent=1 // pred_region
      %79 = dma.done [#allocation7], 512
    $region57: #{tpu_custom_call.1} parent=1 // pred_fallthru
      _
    %v80 = vld [vmem:[#allocation3] sm:$0xff]
    %v81 = vld [vmem:[#allocation6] sm:$0xff]
    %v82 = vld [vmem:[#allocation6 + $0x8] sm:$0xff]
    %v83 = vld [vmem:[#allocation6 + $0x10] sm:$0xff]
    %v84 = vld [vmem:[#allocation6 + $0x18] sm:$0xff]
    %v85 = vld [vmem:[%s2] sm:$0x1]
    %v87 = vlaneseq
    %v88 = vshrl.u32 %v87, 7
    %v89 = vsub.s32 0, %v88
    %v90 = vrot.slane %v85, %v89
    %vm92 = vcmask 261120
    %v94 = vsel %vm92, %v80, 0
    %96 = vmatprep.subr.mxu0 0.0
    %97 = vmatpush1.msra.mxu0 0.0
    %98 = vmatprep.subr.mxu0 0.0
    %99 = vmatpush1.msra.mxu0 0.0
    %100 = vmatprep.subr.mxu0 0.0
    %101 = vmatpush1.msra.mxu0 0.0
    %102 = vmatprep.subr.mxu0 0.0
    %103 = vmatpush1.msra.mxu0 0.0
    %104 = vmatprep.subr.mxu0 0.0
    %105 = vmatpush1.msra.mxu0 0.0
    %106 = vmatprep.subr.mxu0 0.0
    %107 = vmatpush1.msra.mxu0 0.0
    %108 = vmatprep.subr.mxu0 0.0
    %109 = vmatpush1.msra.mxu0 0.0
    %110 = vmatprep.subr.mxu0 0.0
    %111 = vmatpush1.msra.mxu0 0.0
    %112 = vmatprep.subr.mxu0 0.0
    %113 = vmatpush1.msra.mxu0 0.0
    %114 = vmatprep.subr.mxu0 0.0
    %115 = vmatpush1.msra.mxu0 0.0
    %116 = vmatprep.subr.mxu0 0.0
    %117 = vmatpush1.msra.mxu0 0.0
    %118 = vmatprep.subr.mxu0 0.0
    %119 = vmatpush1.msra.mxu0 0.0
    %120 = vmatprep.subr.mxu0 0.0
    %121 = vmatpush1.msra.mxu0 %v84
    %122 = vmatprep.subr.mxu0 0.0
    %123 = vmatpush1.msra.mxu0 %v83
    %124 = vmatprep.subr.mxu0 0.0
    %125 = vmatpush1.msra.mxu0 %v82
    %126 = vmatprep.subr.mxu0 0.0
    %127 = vmatpush1.msra.mxu0 %v81
    %128 = vmatprep.subr.mxu0 0.0
    %129 = vmatpush2.msra.mxu0 0.0
    %130 = vmatprep.subr.mxu0 0.0
    %131 = vmatpush2.msra.mxu0 0.0
    %132 = vmatprep.subr.mxu0 0.0
    %133 = vmatpush2.msra.mxu0 0.0
    %134 = vmatprep.subr.mxu0 0.0
    %135 = vmatpush2.msra.mxu0 0.0
    %136 = vmatprep.subr.mxu0 0.0
    %137 = vmatpush2.msra.mxu0 0.0
    %138 = vmatprep.subr.mxu0 0.0
    %139 = vmatpush2.msra.mxu0 0.0
    %140 = vmatprep.subr.mxu0 0.0
    %141 = vmatpush2.msra.mxu0 0.0
    %142 = vmatprep.subr.mxu0 0.0
    %143 = vmatpush2.msra.mxu0 0.0
    %144 = vmatprep.subr.mxu0 0.0
    %145 = vmatpush2.msra.mxu0 0.0
    %146 = vmatprep.subr.mxu0 0.0
    %147 = vmatpush2.msra.mxu0 0.0
    %148 = vmatprep.subr.mxu0 0.0
    %149 = vmatpush2.msra.mxu0 0.0
    %150 = vmatprep.subr.mxu0 0.0
    %151 = vmatpush2.msra.mxu0 0.0
    %152 = vmatprep.subr.mxu0 0.0
    %153 = vmatpush2.msra.mxu0 0.0
    %154 = vmatprep.subr.mxu0 0.0
    %155 = vmatpush2.msra.mxu0 0.0
    %156 = vmatprep.subr.mxu0 0.0
    %157 = vmatpush2.msra.mxu0 0.0
    %158 = vmatprep.subr.mxu0 0.0
    %159 = vmatpush2.msra.mxu0 0.0
    %160 = vmatprep.mubr.f32.mxu0 0.0
    %161 = vmatmul.mubr.f32.gmra.mxu0 %v94
    %v162 = vpop.f32.mrf.mxu0
    %v163 = vadd.f32 %v90, %v162
    %v164 = vpop.f32.mrf.mxu0
    %165 = vdwg.mxu0
    %v166 = vld [vmem:[%s3] sm:$0x1]
    %v167 = vld [vmem:[%s4] sm:$0x1]
    %v168 = vsel %vm92, %v163, 0.0
    %169 = vadd.xlane.f32.xlu0 %v168
    %v170 = vpop.xlane.xlu0 %169
    %v171 = vmul.f32 %v163, %v163
    %v172 = vsel %vm92, %v171, 0.0
    %173 = vadd.xlane.f32.xlu0 %v172
    %v174 = vpop.xlane.xlu0 %173
    %v175 = vmul.f32 %v170, 0.03125
    %v176 = vmul.f32 %v174, 0.03125
    %v177 = vmul.f32 %v175, %v175
    %v178 = vsub.f32 %v176, %v177
    %v179 = vmax.f32 %v178, 0.0
    %v180 = vsub.f32 %v163, %v175
    %v181 = vadd.f32 %v179, 1e-05
    %v182 = vrsqrt.pop %v181
    %v183 = vmul.f32 %v180, %v182
    %v185 = vlaneseq
    %v186 = vshrl.u32 %v185, 7
    %v187 = vsub.s32 0, %v186
    %v188 = vrot.slane %v166, %v187
    %v190 = vmul.f32 %v183, %v188
    %v192 = vlaneseq
    %v193 = vshrl.u32 %v192, 7
    %v194 = vsub.s32 0, %v193
    %v195 = vrot.slane %v167, %v194
    %v197 = vadd.f32 %v190, %v195
    %v198 = vmax.f32 %v197, 0.0
    %v199 = vadd.f32 %v198, %v80
    %v200 = vld [vmem:[#allocation8] sm:$0xff]
    %v201 = vld [vmem:[#allocation8 + $0x8] sm:$0xff]
    %v202 = vld [vmem:[#allocation8 + $0x10] sm:$0xff]
    %v203 = vld [vmem:[#allocation8 + $0x18] sm:$0xff]
    %v204 = vld [vmem:[%s6] sm:$0x1]
    %v206 = vlaneseq
    %v207 = vshrl.u32 %v206, 7
    %v208 = vsub.s32 0, %v207
    %v209 = vrot.slane %v204, %v208
    %v212 = vsel %vm92, %v199, 0
    %214 = vmatprep.subr.mxu0 0.0
    %215 = vmatpush1.msra.mxu0 0.0
    %216 = vmatprep.subr.mxu0 0.0
    %217 = vmatpush1.msra.mxu0 0.0
    %218 = vmatprep.subr.mxu0 0.0
    %219 = vmatpush1.msra.mxu0 0.0
    %220 = vmatprep.subr.mxu0 0.0
    %221 = vmatpush1.msra.mxu0 0.0
    %222 = vmatprep.subr.mxu0 0.0
    %223 = vmatpush1.msra.mxu0 0.0
    %224 = vmatprep.subr.mxu0 0.0
    %225 = vmatpush1.msra.mxu0 0.0
    %226 = vmatprep.subr.mxu0 0.0
    %227 = vmatpush1.msra.mxu0 0.0
    %228 = vmatprep.subr.mxu0 0.0
    %229 = vmatpush1.msra.mxu0 0.0
    %230 = vmatprep.subr.mxu0 0.0
    %231 = vmatpush1.msra.mxu0 0.0
    %232 = vmatprep.subr.mxu0 0.0
    %233 = vmatpush1.msra.mxu0 0.0
    %234 = vmatprep.subr.mxu0 0.0
    %235 = vmatpush1.msra.mxu0 0.0
    %236 = vmatprep.subr.mxu0 0.0
    %237 = vmatpush1.msra.mxu0 0.0
    %238 = vmatprep.subr.mxu0 0.0
    %239 = vmatpush1.msra.mxu0 %v203
    %240 = vmatprep.subr.mxu0 0.0
    %241 = vmatpush1.msra.mxu0 %v202
    %242 = vmatprep.subr.mxu0 0.0
    %243 = vmatpush1.msra.mxu0 %v201
    %244 = vmatprep.subr.mxu0 0.0
    %245 = vmatpush1.msra.mxu0 %v200
    %246 = vmatprep.subr.mxu0 0.0
    %247 = vmatpush2.msra.mxu0 0.0
    %248 = vmatprep.subr.mxu0 0.0
    %249 = vmatpush2.msra.mxu0 0.0
    %250 = vmatprep.subr.mxu0 0.0
    %251 = vmatpush2.msra.mxu0 0.0
    %252 = vmatprep.subr.mxu0 0.0
    %253 = vmatpush2.msra.mxu0 0.0
    %254 = vmatprep.subr.mxu0 0.0
    %255 = vmatpush2.msra.mxu0 0.0
    %256 = vmatprep.subr.mxu0 0.0
    %257 = vmatpush2.msra.mxu0 0.0
    %258 = vmatprep.subr.mxu0 0.0
    %259 = vmatpush2.msra.mxu0 0.0
    %260 = vmatprep.subr.mxu0 0.0
    %261 = vmatpush2.msra.mxu0 0.0
    %262 = vmatprep.subr.mxu0 0.0
    %263 = vmatpush2.msra.mxu0 0.0
    %264 = vmatprep.subr.mxu0 0.0
    %265 = vmatpush2.msra.mxu0 0.0
    %266 = vmatprep.subr.mxu0 0.0
    %267 = vmatpush2.msra.mxu0 0.0
    %268 = vmatprep.subr.mxu0 0.0
    %269 = vmatpush2.msra.mxu0 0.0
    %270 = vmatprep.subr.mxu0 0.0
    %271 = vmatpush2.msra.mxu0 0.0
    %272 = vmatprep.subr.mxu0 0.0
    %273 = vmatpush2.msra.mxu0 0.0
    %274 = vmatprep.subr.mxu0 0.0
    %275 = vmatpush2.msra.mxu0 0.0
    %276 = vmatprep.subr.mxu0 0.0
    %277 = vmatpush2.msra.mxu0 0.0
    %278 = vmatprep.mubr.f32.mxu0 0.0
    %279 = vmatmul.mubr.f32.gmra.mxu0 %v212
    %v280 = vpop.f32.mrf.mxu0
    %v281 = vadd.f32 %v209, %v280
    %v282 = vpop.f32.mrf.mxu0
    %283 = vdwg.mxu0
    %v284 = vld [vmem:[%s7] sm:$0x1]
    %v285 = vld [vmem:[%s8] sm:$0x1]
    %vm286 = vcmask 523264
    %v287 = vsel %vm286, %v281, 0.0
    %288 = vadd.xlane.f32.xlu0 %v287
    %v289 = vpop.xlane.xlu0 %288
    %v290 = vmul.f32 %v281, %v281
    %v291 = vsel %vm286, %v290, 0.0
    %292 = vadd.xlane.f32.xlu0 %v291
    %v293 = vpop.xlane.xlu0 %292
    %v294 = vmul.f32 %v289, 0.015625
    %v295 = vmul.f32 %v293, 0.015625
    %v296 = vmul.f32 %v294, %v294
    %v297 = vsub.f32 %v295, %v296
    %v298 = vmax.f32 %v297, 0.0
    %v299 = vsub.f32 %v281, %v294
    %v300 = vadd.f32 %v298, 1e-05
    %v301 = vrsqrt.pop %v300
    %v302 = vmul.f32 %v299, %v301
    %v304 = vlaneseq
    %v305 = vshrl.u32 %v304, 7
    %v306 = vsub.s32 0, %v305
    %v307 = vrot.slane %v284, %v306
    %v309 = vmul.f32 %v302, %v307
    %v311 = vlaneseq
    %v312 = vshrl.u32 %v311, 7
    %v313 = vsub.s32 0, %v312
    %v314 = vrot.slane %v285, %v313
    %v316 = vadd.f32 %v309, %v314
    %v317 = vmax.f32 %v316, 0.0
    %319 = vrot.lane.b32.xlu0 %v281, 64
    %v320 = vpop.permute.xlu0 %319
    %v322 = vadd.f32 %v317, %v320
    %v323 = vld [vmem:[%s9] sm:$0x1]
    %v324 = vld [vmem:[#allocation2] sm:$0x1]
    %326 = vset.pattern.permute.xlu0 0
    %327 = vperm.xlu0 %326, %v324
    %v328 = vpop.permute.xlu0 %327
    %v330 = vlaneseq
    %v331 = vshrl.u32 %v330, 7
    %v332 = vsub.s32 0, %v331
    %v333 = vrot.slane %v328, %v332
    %v335 = vsel %vm286, %v323, 0
    %v338 = vsel %vm286, %v322, 0
    %340 = vmatprep.subr.mxu0 0.0
    %341 = vmatpush1.xpose.msra.mxu0 0.0
    %342 = vmatprep.subr.mxu0 0.0
    %343 = vmatpush1.xpose.msra.mxu0 0.0
    %344 = vmatprep.subr.mxu0 0.0
    %345 = vmatpush1.xpose.msra.mxu0 0.0
    %346 = vmatprep.subr.mxu0 0.0
    %347 = vmatpush1.xpose.msra.mxu0 0.0
    %348 = vmatprep.subr.mxu0 0.0
    %349 = vmatpush1.xpose.msra.mxu0 0.0
    %350 = vmatprep.subr.mxu0 0.0
    %351 = vmatpush1.xpose.msra.mxu0 0.0
    %352 = vmatprep.subr.mxu0 0.0
    %353 = vmatpush1.xpose.msra.mxu0 0.0
    %354 = vmatprep.subr.mxu0 0.0
    %355 = vmatpush1.xpose.msra.mxu0 0.0
    %356 = vmatprep.subr.mxu0 0.0
    %357 = vmatpush1.xpose.msra.mxu0 0.0
    %358 = vmatprep.subr.mxu0 0.0
    %359 = vmatpush1.xpose.msra.mxu0 0.0
    %360 = vmatprep.subr.mxu0 0.0
    %361 = vmatpush1.xpose.msra.mxu0 0.0
    %362 = vmatprep.subr.mxu0 0.0
    %363 = vmatpush1.xpose.msra.mxu0 0.0
    %364 = vmatprep.subr.mxu0 0.0
    %365 = vmatpush1.xpose.msra.mxu0 0.0
    %366 = vmatprep.subr.mxu0 0.0
    %367 = vmatpush1.xpose.msra.mxu0 0.0
    %368 = vmatprep.subr.mxu0 0.0
    %369 = vmatpush1.xpose.msra.mxu0 0.0
    %370 = vmatprep.subr.mxu0 0.0
    %371 = vmatpush1.xpose.msra.mxu0 %v338
    %372 = vmatprep.subr.mxu0 0.0
    %373 = vmatpush2.xpose.msra.mxu0 0.0
    %374 = vmatprep.subr.mxu0 0.0
    %375 = vmatpush2.xpose.msra.mxu0 0.0
    %376 = vmatprep.subr.mxu0 0.0
    %377 = vmatpush2.xpose.msra.mxu0 0.0
    %378 = vmatprep.subr.mxu0 0.0
    %379 = vmatpush2.xpose.msra.mxu0 0.0
    %380 = vmatprep.subr.mxu0 0.0
    %381 = vmatpush2.xpose.msra.mxu0 0.0
    %382 = vmatprep.subr.mxu0 0.0
    %383 = vmatpush2.xpose.msra.mxu0 0.0
    %384 = vmatprep.subr.mxu0 0.0
    %385 = vmatpush2.xpose.msra.mxu0 0.0
    %386 = vmatprep.subr.mxu0 0.0
    %387 = vmatpush2.xpose.msra.mxu0 0.0
    %388 = vmatprep.subr.mxu0 0.0
    %389 = vmatpush2.xpose.msra.mxu0 0.0
    %390 = vmatprep.subr.mxu0 0.0
    %391 = vmatpush2.xpose.msra.mxu0 0.0
    %392 = vmatprep.subr.mxu0 0.0
    %393 = vmatpush2.xpose.msra.mxu0 0.0
    %394 = vmatprep.subr.mxu0 0.0
    %395 = vmatpush2.xpose.msra.mxu0 0.0
    %396 = vmatprep.subr.mxu0 0.0
    %397 = vmatpush2.xpose.msra.mxu0 0.0
    %398 = vmatprep.subr.mxu0 0.0
    %399 = vmatpush2.xpose.msra.mxu0 0.0
    %400 = vmatprep.subr.mxu0 0.0
    %401 = vmatpush2.xpose.msra.mxu0 0.0
    %402 = vmatprep.subr.mxu0 0.0
    %403 = vmatpush2.xpose.msra.mxu0 0.0
    %404 = vmatprep.mubr.f32.mxu0 0.0
    %405 = vmatmul.mubr.f32.gmra.mxu0 %v335
    %v406 = vpop.f32.mrf.mxu0
    %v407 = vadd.f32 %v333, %v406
    %v408 = vpop.f32.mrf.mxu0
    %409 = vdwg.mxu0
    %vm410 = vcmask 57344
    %411 = vst.msk [vmem:[#allocation9] sm:$0x1] %vm410, %v407
    // Predicated region
    $region58: #{tpu_custom_call.1} parent=1 // pred_check
      _
    $region59: #{tpu_custom_call.1} parent=1 // pred_check_branch
      %413 = sbr.rel (0) target = $region61
    $region60: #{tpu_custom_call.1} parent=1 // pred_region
      %s415 = ssub.s32 16, 16
      %416 = vsyncadd [#allocation5], %s415
      %s418 = sshll.u32 [#allocation9], 4
      %s419 = int_to_ptr.vmem [resolvable:$true] %s418
      %421 = dma.vmem_to_hbm [thread:$0]  %s419, 16, %s11, [#allocation5]
    $region61: #{tpu_custom_call.1} parent=1 // pred_fallthru
      _
    // Predicated region
    $region62: #{tpu_custom_call.1} parent=1 // pred_check
      _
    $region63: #{tpu_custom_call.1} parent=1 // pred_check_branch
      %423 = sbr.rel (0) target = $region65
    $region64: #{tpu_custom_call.1} parent=1 // pred_region
      %424 = dma.done [#allocation5], 16
    $region65: #{tpu_custom_call.1} parent=1 // pred_fallthru
      _
    %425 = vsyncpa [#allocation4], 1
    %426 = vsyncpa [#allocation7], 1
    %427 = vsyncpa [#allocation5], 1

</llo_original>
